<compile_context>
chip_gen: v5e
topology: v5e:2x2
jax: 0.10.0
libtpu: 0.0.40
codegen_flags: <defaults>
</compile_context>

<pallas_src>
import functools

import jax
import jax.numpy as jnp
from jax.experimental import pallas as pl
from jax.experimental.pallas import tpu as pltpu

LANE = 128      # lane width of a vreg
SUBLANE = 8     # sublane count of a vreg


def _round_up(a, m):
    return ((a + m - 1) // m) * m


def _pad2d(a, rows, cols):
    return jnp.pad(a, ((0, rows - a.shape[0]), (0, cols - a.shape[1])))


def _tpu_generation():
    """Best-effort chip-generation sniff; unknown chips get conservative settings."""
    try:
        kind = jax.devices()[0].device_kind.lower()
    except Exception:
        kind = ""
    if "v7" in kind or "7x" in kind:
        return 7
    if "v6" in kind:
        return 6
    if "v5" in kind:
        return 5
    return 0


def _plan(B, H, H2, C, itemsize, tm_req, tk_req):
    """Derive padded extents and tile sizes under a per-generation VMEM budget."""
    gen = _tpu_generation()

    # v6e/v7x MXUs are 2x256^2: pad feature dims to 256 to fill each MXU pass;
    # v5e's 4x128^2 MXUs are already full at 128.
    feat = 256 if gen in (6, 7) else LANE
    H2p = _round_up(H2, feat)
    Cp = _round_up(C, feat)

    # VMEM budget: v7x has 64 MiB physical (and unknown chips get the same,
    # conservative, budget); v5e/v6e have 128 MiB.
    vmem_budget = (100 if gen in (5, 6) else 48) * 1024 * 1024

    # Pad B to a sublane multiple and H to a lane multiple first, then pick
    # tiles that (nearly) divide those extents -> no large all-zero tiles.
    Bp8 = _round_up(B, SUBLANE)
    Hp128 = _round_up(H, LANE)
    tm = max(SUBLANE, min(tm_req, Bp8))
    tk = max(LANE, min(tk_req, Hp128))

    # v7x only: guarantee >=2 batch tiles so the "parallel" axis shards across
    # both TensorCores (shrinking tm, never running a single mega-tile).
    if gen == 7 and Bp8 >= 2 * SUBLANE:
        tm = min(tm, _round_up(pl.cdiv(Bp8, 2), SUBLANE))

    def fit(tm_c, tk_c):
        n_m = pl.cdiv(Bp8, tm_c)
        tm_e = _round_up(pl.cdiv(Bp8, n_m), SUBLANE)
        n_k = pl.cdiv(Hp128, tk_c)
        tk_e = _round_up(pl.cdiv(Hp128, n_k), LANE)
        used = ((2 * tm_e * tk_e             # x tile (double-buffered)
                 + 2 * tk_e * H2p            # W1.T tile (double-buffered)
                 + H2p * Cp + H2p + Cp       # W2.T / b1 / b2 (single-buffered)
                 + 2 * tm_e * Cp) * itemsize # out tile (double-buffered)
                + tm_e * H2p * 4)            # f32 accumulator scratch
        return n_m, tm_e, n_k, tk_e, used

    while True:
        n_m, tm_e, n_k, tk_e, used = fit(tm, tk)
        if used <= vmem_budget or (tm <= SUBLANE and tk <= LANE):
            break
        if tk > LANE:
            tk = max(LANE, tk // 2)
        else:
            tm = max(SUBLANE, tm // 2)

    return dict(H2p=H2p, Cp=Cp, tm=tm_e, tk=tk_e,
                Bp=n_m * tm_e, Hp=n_k * tk_e,
                vmem_limit=int(vmem_budget))


def classifier_kernel(x_ref, w1_ref, b1_ref, w2_ref, b2_ref, o_ref, acc_ref, *,
                      num_classes):
    """Fused linear -> linear -> log_softmax; layer-1 accumulated over K tiles."""
    k = pl.program_id(1)

    @pl.when(k == 0)
    def _():
        acc_ref[...] = jnp.zeros_like(acc_ref)

    # Layer-1 partial product on the MXU with f32 accumulation in VMEM scratch.
    acc_ref[...] += jnp.dot(x_ref[...], w1_ref[...],
                            preferred_element_type=jnp.float32)

    @pl.when(k == pl.num_programs(1) - 1)
    def _():
        # Bias added exactly once (finalize), not per K step.
        y1 = acc_ref[...] + b1_ref[...].astype(jnp.float32)              # (tm, H2p)
        # Keep layer-2 on the weights' native MXU path: cast the activation down
        # to W2's dtype instead of up-casting the whole W2 tile to f32.
        logits = jnp.dot(y1.astype(w2_ref.dtype), w2_ref[...],
                         preferred_element_type=jnp.float32)
        logits = logits + b2_ref[...].astype(jnp.float32)                # (tm, Cp)

        # Mask padded class lanes so they do not contribute to the softmax.
        col = jax.lax.broadcasted_iota(jnp.int32, logits.shape, 1)
        logits = jnp.where(col < num_classes, logits, -1e30)

        # Numerically stable log-softmax over the (lane-dense, padded) class dim.
        m = jnp.max(logits, axis=-1, keepdims=True)
        s = logits - m
        lse = jnp.log(jnp.sum(jnp.exp(s), axis=-1, keepdims=True))
        o_ref[...] = (s - lse).astype(o_ref.dtype)


def classifier_forward(x, w1, b1, w2, b2, *, tm=256, tk=1024, compute_dtype=None):
    """x: (B, hidden_dim). w1: (hidden2, hidden_dim), b1: (hidden2,),
    w2: (classification_dim, hidden2), b2: (classification_dim,)  (PyTorch layout).
    Returns log_softmax((x @ w1.T + b1) @ w2.T + b2, axis=1) of shape (B, classes).
    compute_dtype (e.g. jnp.bfloat16) optionally casts x/W1/W2 for the MXU path
    while keeping an f32 accumulator and f32 softmax math."""
    B, H = x.shape
    H2, H_in = w1.shape
    C, H2_in = w2.shape
    assert H_in == H and H2_in == H2, "weight shapes inconsistent with input"

    dtype = compute_dtype if compute_dtype is not None else x.dtype
    plan = _plan(B, H, H2, C, jnp.dtype(dtype).itemsize, tm, tk)
    H2p, Cp = plan["H2p"], plan["Cp"]
    tm, tk = plan["tm"], plan["tk"]
    Bp, Hp = plan["Bp"], plan["Hp"]

    # Zero-padded operands; weights pre-transposed so the kernel computes x @ W.
    xp = _pad2d(x.astype(dtype), Bp, Hp)
    w1t = _pad2d(w1.T.astype(dtype), Hp, H2p)
    b1p = _pad2d(b1.reshape(1, -1), 1, H2p)
    w2t = _pad2d(w2.T.astype(dtype), H2p, Cp)
    b2p = _pad2d(b2.reshape(1, -1), 1, Cp)

    grid = (Bp // tm, Hp // tk)
    kernel = functools.partial(classifier_kernel, num_classes=C)

    def run(single_buffer_resident):
        # Constant-index operands are DMA'd once; single-buffering them halves
        # their VMEM footprint (matters most on v7x's 64 MiB VMEM).
        resident = ({"pipeline_mode": pl.Buffered(1)}
                    if single_buffer_resident else {})
        in_specs = [
            pl.BlockSpec((tm, tk), lambda i, k: (i, k)),                # x tile
            pl.BlockSpec((tk, H2p), lambda i, k: (k, 0)),               # W1.T (K-streamed)
            pl.BlockSpec((1, H2p), lambda i, k: (0, 0), **resident),    # b1
            pl.BlockSpec((H2p, Cp), lambda i, k: (0, 0), **resident),   # W2.T (resident)
            pl.BlockSpec((1, Cp), lambda i, k: (0, 0), **resident),     # b2
        ]
        out_specs = pl.BlockSpec((tm, Cp), lambda i, k: (i, 0))         # resident over K
        return pl.pallas_call(
            kernel,
            out_shape=jax.ShapeDtypeStruct((Bp, Cp), x.dtype),
            grid_spec=pltpu.PrefetchScalarGridSpec(
                num_scalar_prefetch=0,
                grid=grid,
                in_specs=in_specs,
                out_specs=out_specs,
                scratch_shapes=[pltpu.VMEM((tm, H2p), jnp.float32)],
            ),
            compiler_params=pltpu.CompilerParams(
                dimension_semantics=("parallel", "arbitrary"),
                vmem_limit_bytes=plan["vmem_limit"],
            ),
        )(xp, w1t, b1p, w2t, b2p)

    try:
        out_p = run(True)
    except Exception:
        # Fallback for jax versions without pipeline_mode / Buffered(1) support.
        out_p = run(False)

    # Strip batch / class padding.
    return out_p[:B, :C]


if __name__ == "__main__":
    # Small shapes consistent with the module: hidden_dim=32, hidden2=16, classes=2.
    B, hidden_dim, hidden2, num_classes = 8, 32, 16, 2

    key = jax.random.PRNGKey(0)
    kx, kw1, kb1, kw2, kb2 = jax.random.split(key, 5)

    # Mimic nn.Linear's uniform(-1/sqrt(fan_in), 1/sqrt(fan_in)) init.
    bound1 = 1.0 / jnp.sqrt(jnp.float32(hidden_dim))
    w1 = jax.random.uniform(kw1, (hidden2, hidden_dim), jnp.float32, -bound1, bound1)
    b1 = jax.random.uniform(kb1, (hidden2,), jnp.float32, -bound1, bound1)
    bound2 = 1.0 / jnp.sqrt(jnp.float32(hidden2))
    w2 = jax.random.uniform(kw2, (num_classes, hidden2), jnp.float32, -bound2, bound2)
    b2 = jax.random.uniform(kb2, (num_classes,), jnp.float32, -bound2, bound2)

    x = jax.random.normal(kx, (B, hidden_dim), jnp.float32)

    out = classifier_forward(x, w1, b1, w2, b2)
    jax.block_until_ready(out)

    # Pure-JAX reference (same math as the PyTorch forward).
    logits_ref = (x @ w1.T + b1) @ w2.T + b2
    ref = jax.nn.log_softmax(logits_ref, axis=1)

    assert out.shape == (B, num_classes), f"bad shape {out.shape}"
    assert jnp.allclose(out, ref, atol=1e-5, rtol=1e-5), "mismatch vs reference"

    print("KERNEL_OK")
</pallas_src>

<mosaic_0001>
module attributes {stable_mosaic.version = 11 : i64} {
  func.func @classifier_kernel(%arg0: i32, %arg1: i32, %arg2: memref<8x128xf32, #tpu.memory_space<vmem>>, %arg3: memref<128x128xf32, #tpu.memory_space<vmem>>, %arg4: memref<1x128xf32, #tpu.memory_space<vmem>>, %arg5: memref<128x128xf32, #tpu.memory_space<vmem>>, %arg6: memref<1x128xf32, #tpu.memory_space<vmem>>, %arg7: memref<8x128xf32, #tpu.memory_space<vmem>>, %arg8: memref<8x128xf32, #tpu.memory_space<vmem>>) attributes {dimension_semantics = [#tpu.dimension_semantics<parallel>, #tpu.dimension_semantics<arbitrary>], iteration_bounds = array<i64: 1, 1>, scalar_prefetch = 0 : i64, scratch_operands = 1 : i64, tpu.core_type = #tpu.core_type<tc>, window_params = [{transform_indices = @transform_0, window_bounds = array<i64: 8, 128>}, {transform_indices = @transform_1, window_bounds = array<i64: 128, 128>}, {pipeline_mode = #tpu.pipeline_mode<synchronous>, transform_indices = @transform_2, window_bounds = array<i64: 1, 128>}, {pipeline_mode = #tpu.pipeline_mode<synchronous>, transform_indices = @transform_3, window_bounds = array<i64: 128, 128>}, {pipeline_mode = #tpu.pipeline_mode<synchronous>, transform_indices = @transform_4, window_bounds = array<i64: 1, 128>}, {transform_indices = @transform_5, window_bounds = array<i64: 8, 128>}]} {
    %c0_i32 = arith.constant 0 : i32
    %0 = arith.cmpi eq, %arg1, %c0_i32 : i32
    %1 = arith.extui %0 : i1 to i32
    %c0_i32_0 = arith.constant 0 : i32
    %2 = arith.cmpi ne, %1, %c0_i32_0 : i32
    scf.if %2 {
      %cst_10 = arith.constant 0.000000e+00 : f32
      %12 = vector.broadcast %cst_10 : f32 to vector<8x128xf32>
      %c0_11 = arith.constant 0 : index
      %c0_12 = arith.constant 0 : index
      %13 = vector.load %arg8[%c0_11, %c0_12] : memref<8x128xf32, #tpu.memory_space<vmem>>, vector<8x128xf32>
      tpu.vector_store %arg8[%c0_11, %c0_12], %12 {strides = array<i32>} : memref<8x128xf32, #tpu.memory_space<vmem>>, vector<8x128xf32>,
    } else {
    }
    %c0 = arith.constant 0 : index
    %c0_1 = arith.constant 0 : index
    %3 = vector.load %arg8[%c0, %c0_1] : memref<8x128xf32, #tpu.memory_space<vmem>>, vector<8x128xf32>
    %c0_2 = arith.constant 0 : index
    %c0_3 = arith.constant 0 : index
    %4 = vector.load %arg2[%c0_2, %c0_3] : memref<8x128xf32, #tpu.memory_space<vmem>>, vector<8x128xf32>
    %c0_4 = arith.constant 0 : index
    %c0_5 = arith.constant 0 : index
    %5 = vector.load %arg3[%c0_4, %c0_5] : memref<128x128xf32, #tpu.memory_space<vmem>>, vector<128x128xf32>
    %cst = arith.constant dense<0.000000e+00> : vector<8x128xf32>
    %6 = tpu.matmul %4, %5, %cst {dimension_numbers = #tpu.dot_dimension_numbers<[1], [0], [0], [1], [0, 0, 1, 1], [], []>} : vector<8x128xf32>, vector<128x128xf32>, vector<8x128xf32> -> vector<8x128xf32>
    %7 = arith.addf %3, %6 : vector<8x128xf32>
    %c0_6 = arith.constant 0 : index
    %c0_7 = arith.constant 0 : index
    %8 = vector.load %arg8[%c0_6, %c0_7] : memref<8x128xf32, #tpu.memory_space<vmem>>, vector<8x128xf32>
    tpu.vector_store %arg8[%c0_6, %c0_7], %7 {strides = array<i32>} : memref<8x128xf32, #tpu.memory_space<vmem>>, vector<8x128xf32>,
    %c0_i32_8 = arith.constant 0 : i32
    %9 = arith.cmpi eq, %arg1, %c0_i32_8 : i32
    %10 = arith.extui %9 : i1 to i32
    %c0_i32_9 = arith.constant 0 : i32
    %11 = arith.cmpi ne, %10, %c0_i32_9 : i32
    scf.if %11 {
      %c0_10 = arith.constant 0 : index
      %c0_11 = arith.constant 0 : index
      %12 = vector.load %arg8[%c0_10, %c0_11] : memref<8x128xf32, #tpu.memory_space<vmem>>, vector<8x128xf32>
      %c0_12 = arith.constant 0 : index
      %c0_13 = arith.constant 0 : index
      %13 = vector.load %arg4[%c0_12, %c0_13] : memref<1x128xf32, #tpu.memory_space<vmem>>, vector<1x128xf32>
      %14 = vector.broadcast %13 : vector<1x128xf32> to vector<8x128xf32>
      %15 = arith.addf %12, %14 : vector<8x128xf32>
      %c0_14 = arith.constant 0 : index
      %c0_15 = arith.constant 0 : index
      %16 = vector.load %arg5[%c0_14, %c0_15] : memref<128x128xf32, #tpu.memory_space<vmem>>, vector<128x128xf32>
      %cst_16 = arith.constant dense<0.000000e+00> : vector<8x128xf32>
      %17 = tpu.matmul %15, %16, %cst_16 {dimension_numbers = #tpu.dot_dimension_numbers<[1], [0], [0], [1], [0, 0, 1, 1], [], []>} : vector<8x128xf32>, vector<128x128xf32>, vector<8x128xf32> -> vector<8x128xf32>
      %c0_17 = arith.constant 0 : index
      %c0_18 = arith.constant 0 : index
      %18 = vector.load %arg6[%c0_17, %c0_18] : memref<1x128xf32, #tpu.memory_space<vmem>>, vector<1x128xf32>
      %19 = vector.broadcast %18 : vector<1x128xf32> to vector<8x128xf32>
      %20 = arith.addf %17, %19 : vector<8x128xf32>
      %21 = tpu.iota {dimensions = array<i32: 1>} : vector<8x128xi32>
      %c2_i32 = arith.constant 2 : i32
      %22 = vector.broadcast %c2_i32 : i32 to vector<8x128xi32>
      %23 = arith.cmpi slt, %21, %22 : vector<8x128xi32>
      %cst_19 = arith.constant -1.000000e+30 : f32
      %24 = vector.broadcast %cst_19 : f32 to vector<8x128xf32>
      %25 = arith.select %23, %20, %24 : vector<8x128xi1>, vector<8x128xf32>
      %cst_20 = arith.constant dense<0xFF800000> : vector<8xf32>
      %26 = vector.multi_reduction <maximumf>, %25, %cst_20 [1] : vector<8x128xf32> to vector<8xf32>
      %27 = vector.shape_cast %26 : vector<8xf32> to vector<8x1xf32>
      %28 = vector.broadcast %27 : vector<8x1xf32> to vector<8x128xf32>
      %29 = arith.subf %25, %28 : vector<8x128xf32>
      %30 = math.exp %29 : vector<8x128xf32>
      %cst_21 = arith.constant dense<0.000000e+00> : vector<8xf32>
      %31 = vector.multi_reduction <add>, %30, %cst_21 [1] : vector<8x128xf32> to vector<8xf32>
      %32 = vector.shape_cast %31 : vector<8xf32> to vector<8x1xf32>
      %33 = math.log %32 : vector<8x1xf32>
      %34 = vector.broadcast %33 : vector<8x1xf32> to vector<8x128xf32>
      %35 = arith.subf %29, %34 : vector<8x128xf32>
      %c0_22 = arith.constant 0 : index
      %c0_23 = arith.constant 0 : index
      %36 = vector.load %arg7[%c0_22, %c0_23] : memref<8x128xf32, #tpu.memory_space<vmem>>, vector<8x128xf32>
      tpu.vector_store %arg7[%c0_22, %c0_23], %35 {strides = array<i32>} : memref<8x128xf32, #tpu.memory_space<vmem>>, vector<8x128xf32>,
    } else {
    }
    return
  }
  func.func @transform_0(%arg0: i32, %arg1: i32) -> (i32, i32) {
    %c0_i32 = arith.constant 0 : i32
    return %arg0, %arg1 : i32, i32
  }
  func.func @transform_1(%arg0: i32, %arg1: i32) -> (i32, i32) {
    %c0_i32 = arith.constant 0 : i32
    %c0_i32_0 = arith.constant 0 : i32
    return %arg1, %c0_i32 : i32, i32
  }
  func.func @transform_2(%arg0: i32, %arg1: i32) -> (i32, i32) {
    %c0_i32 = arith.constant 0 : i32
    %c0_i32_0 = arith.constant 0 : i32
    %c0_i32_1 = arith.constant 0 : i32
    return %c0_i32, %c0_i32_0 : i32, i32
  }
  func.func @transform_3(%arg0: i32, %arg1: i32) -> (i32, i32) {
    %c0_i32 = arith.constant 0 : i32
    %c0_i32_0 = arith.constant 0 : i32
    %c0_i32_1 = arith.constant 0 : i32
    return %c0_i32, %c0_i32_0 : i32, i32
  }
  func.func @transform_4(%arg0: i32, %arg1: i32) -> (i32, i32) {
    %c0_i32 = arith.constant 0 : i32
    %c0_i32_0 = arith.constant 0 : i32
    %c0_i32_1 = arith.constant 0 : i32
    return %c0_i32, %c0_i32_0 : i32, i32
  }
  func.func @transform_5(%arg0: i32, %arg1: i32) -> (i32, i32) {
    %c0_i32 = arith.constant 0 : i32
    %c0_i32_0 = arith.constant 0 : i32
    return %arg0, %c0_i32 : i32, i32
  }
}

module attributes {stable_mosaic.version = 11 : i64} {
  func.func @classifier_kernel(%arg0: i32, %arg1: i32, %arg2: memref<8x128xf32, #tpu.memory_space<vmem>>, %arg3: memref<128x128xf32, #tpu.memory_space<vmem>>, %arg4: memref<1x128xf32, #tpu.memory_space<vmem>>, %arg5: memref<128x128xf32, #tpu.memory_space<vmem>>, %arg6: memref<1x128xf32, #tpu.memory_space<vmem>>, %arg7: memref<8x128xf32, #tpu.memory_space<vmem>>, %arg8: memref<8x128xf32, #tpu.memory_space<vmem>>) attributes {dimension_semantics = [#tpu.dimension_semantics<parallel>, #tpu.dimension_semantics<arbitrary>], iteration_bounds = array<i64: 1, 1>, scalar_prefetch = 0 : i64, scratch_operands = 1 : i64, tpu.core_type = #tpu.core_type<tc>, window_params = [{transform_indices = @transform_0, window_bounds = array<i64: 8, 128>}, {transform_indices = @transform_1, window_bounds = array<i64: 128, 128>}, {pipeline_mode = #tpu.pipeline_mode<synchronous>, transform_indices = @transform_2, window_bounds = array<i64: 1, 128>}, {pipeline_mode = #tpu.pipeline_mode<synchronous>, transform_indices = @transform_3, window_bounds = array<i64: 128, 128>}, {pipeline_mode = #tpu.pipeline_mode<synchronous>, transform_indices = @transform_4, window_bounds = array<i64: 1, 128>}, {transform_indices = @transform_5, window_bounds = array<i64: 8, 128>}]} {
    %c0_i32 = arith.constant 0 : i32
    %0 = arith.cmpi eq, %arg1, %c0_i32 : i32
    %1 = arith.extui %0 : i1 to i32
    %c0_i32_0 = arith.constant 0 : i32
    %2 = arith.cmpi ne, %1, %c0_i32_0 : i32
    scf.if %2 {
      %cst_10 = arith.constant 0.000000e+00 : f32
      %12 = vector.broadcast %cst_10 : f32 to vector<8x128xf32>
      %c0_11 = arith.constant 0 : index
      %c0_12 = arith.constant 0 : index
      %13 = vector.load %arg8[%c0_11, %c0_12] : memref<8x128xf32, #tpu.memory_space<vmem>>, vector<8x128xf32>
      tpu.vector_store %arg8[%c0_11, %c0_12], %12 {strides = array<i32>} : memref<8x128xf32, #tpu.memory_space<vmem>>, vector<8x128xf32>,
    } else {
    }
    %c0 = arith.constant 0 : index
    %c0_1 = arith.constant 0 : index
    %3 = vector.load %arg8[%c0, %c0_1] : memref<8x128xf32, #tpu.memory_space<vmem>>, vector<8x128xf32>
    %c0_2 = arith.constant 0 : index
    %c0_3 = arith.constant 0 : index
    %4 = vector.load %arg2[%c0_2, %c0_3] : memref<8x128xf32, #tpu.memory_space<vmem>>, vector<8x128xf32>
    %c0_4 = arith.constant 0 : index
    %c0_5 = arith.constant 0 : index
    %5 = vector.load %arg3[%c0_4, %c0_5] : memref<128x128xf32, #tpu.memory_space<vmem>>, vector<128x128xf32>
    %cst = arith.constant dense<0.000000e+00> : vector<8x128xf32>
    %6 = tpu.matmul %4, %5, %cst {dimension_numbers = #tpu.dot_dimension_numbers<[1], [0], [0], [1], [0, 0, 1, 1], [], []>} : vector<8x128xf32>, vector<128x128xf32>, vector<8x128xf32> -> vector<8x128xf32>
    %7 = arith.addf %3, %6 : vector<8x128xf32>
    %c0_6 = arith.constant 0 : index
    %c0_7 = arith.constant 0 : index
    %8 = vector.load %arg8[%c0_6, %c0_7] : memref<8x128xf32, #tpu.memory_space<vmem>>, vector<8x128xf32>
    tpu.vector_store %arg8[%c0_6, %c0_7], %7 {strides = array<i32>} : memref<8x128xf32, #tpu.memory_space<vmem>>, vector<8x128xf32>,
    %c0_i32_8 = arith.constant 0 : i32
    %9 = arith.cmpi eq, %arg1, %c0_i32_8 : i32
    %10 = arith.extui %9 : i1 to i32
    %c0_i32_9 = arith.constant 0 : i32
    %11 = arith.cmpi ne, %10, %c0_i32_9 : i32
    scf.if %11 {
      %c0_10 = arith.constant 0 : index
      %c0_11 = arith.constant 0 : index
      %12 = vector.load %arg8[%c0_10, %c0_11] : memref<8x128xf32, #tpu.memory_space<vmem>>, vector<8x128xf32>
      %c0_12 = arith.constant 0 : index
      %c0_13 = arith.constant 0 : index
      %13 = vector.load %arg4[%c0_12, %c0_13] : memref<1x128xf32, #tpu.memory_space<vmem>>, vector<1x128xf32>
      %14 = vector.broadcast %13 : vector<1x128xf32> to vector<8x128xf32>
      %15 = arith.addf %12, %14 : vector<8x128xf32>
      %c0_14 = arith.constant 0 : index
      %c0_15 = arith.constant 0 : index
      %16 = vector.load %arg5[%c0_14, %c0_15] : memref<128x128xf32, #tpu.memory_space<vmem>>, vector<128x128xf32>
      %cst_16 = arith.constant dense<0.000000e+00> : vector<8x128xf32>
      %17 = tpu.matmul %15, %16, %cst_16 {dimension_numbers = #tpu.dot_dimension_numbers<[1], [0], [0], [1], [0, 0, 1, 1], [], []>} : vector<8x128xf32>, vector<128x128xf32>, vector<8x128xf32> -> vector<8x128xf32>
      %c0_17 = arith.constant 0 : index
      %c0_18 = arith.constant 0 : index
      %18 = vector.load %arg6[%c0_17, %c0_18] : memref<1x128xf32, #tpu.memory_space<vmem>>, vector<1x128xf32>
      %19 = vector.broadcast %18 : vector<1x128xf32> to vector<8x128xf32>
      %20 = arith.addf %17, %19 : vector<8x128xf32>
      %21 = tpu.iota {dimensions = array<i32: 1>} : vector<8x128xi32>
      %c2_i32 = arith.constant 2 : i32
      %22 = vector.broadcast %c2_i32 : i32 to vector<8x128xi32>
      %23 = arith.cmpi slt, %21, %22 : vector<8x128xi32>
      %cst_19 = arith.constant -1.000000e+30 : f32
      %24 = vector.broadcast %cst_19 : f32 to vector<8x128xf32>
      %25 = arith.select %23, %20, %24 : vector<8x128xi1>, vector<8x128xf32>
      %cst_20 = arith.constant dense<0xFF800000> : vector<8xf32>
      %26 = vector.multi_reduction <maximumf>, %25, %cst_20 [1] : vector<8x128xf32> to vector<8xf32>
      %27 = vector.shape_cast %26 : vector<8xf32> to vector<8x1xf32>
      %28 = vector.broadcast %27 : vector<8x1xf32> to vector<8x128xf32>
      %29 = arith.subf %25, %28 : vector<8x128xf32>
      %30 = math.exp %29 : vector<8x128xf32>
      %cst_21 = arith.constant dense<0.000000e+00> : vector<8xf32>
      %31 = vector.multi_reduction <add>, %30, %cst_21 [1] : vector<8x128xf32> to vector<8xf32>
      %32 = vector.shape_cast %31 : vector<8xf32> to vector<8x1xf32>
      %33 = math.log %32 : vector<8x1xf32>
      %34 = vector.broadcast %33 : vector<8x1xf32> to vector<8x128xf32>
      %35 = arith.subf %29, %34 : vector<8x128xf32>
      %c0_22 = arith.constant 0 : index
      %c0_23 = arith.constant 0 : index
      %36 = vector.load %arg7[%c0_22, %c0_23] : memref<8x128xf32, #tpu.memory_space<vmem>>, vector<8x128xf32>
      tpu.vector_store %arg7[%c0_22, %c0_23], %35 {strides = array<i32>} : memref<8x128xf32, #tpu.memory_space<vmem>>, vector<8x128xf32>,
    } else {
    }
    return
  }
  func.func @transform_0(%arg0: i32, %arg1: i32) -> (i32, i32) {
    %c0_i32 = arith.constant 0 : i32
    return %arg0, %arg1 : i32, i32
  }
  func.func @transform_1(%arg0: i32, %arg1: i32) -> (i32, i32) {
    %c0_i32 = arith.constant 0 : i32
    %c0_i32_0 = arith.constant 0 : i32
    return %arg1, %c0_i32 : i32, i32
  }
  func.func @transform_2(%arg0: i32, %arg1: i32) -> (i32, i32) {
    %c0_i32 = arith.constant 0 : i32
    %c0_i32_0 = arith.constant 0 : i32
    %c0_i32_1 = arith.constant 0 : i32
    return %c0_i32, %c0_i32_0 : i32, i32
  }
  func.func @transform_3(%arg0: i32, %arg1: i32) -> (i32, i32) {
    %c0_i32 = arith.constant 0 : i32
    %c0_i32_0 = arith.constant 0 : i32
    %c0_i32_1 = arith.constant 0 : i32
    return %c0_i32, %c0_i32_0 : i32, i32
  }
  func.func @transform_4(%arg0: i32, %arg1: i32) -> (i32, i32) {
    %c0_i32 = arith.constant 0 : i32
    %c0_i32_0 = arith.constant 0 : i32
    %c0_i32_1 = arith.constant 0 : i32
    return %c0_i32, %c0_i32_0 : i32, i32
  }
  func.func @transform_5(%arg0: i32, %arg1: i32) -> (i32, i32) {
    %c0_i32 = arith.constant 0 : i32
    %c0_i32_0 = arith.constant 0 : i32
    return %arg0, %c0_i32 : i32, i32
  }
}

</mosaic_0001>

<llo_original>
// kernel: tpu_custom_call.1
$region0: #{tpu_custom_call.1}
  #allocation0 [shape = 'u32[]', space=smem, size = 0x4, offset = 0x4, fixed_abs, tag = 'smem constant byte address 0x4 - core index']
  #allocation1 [shape = 'u32[72,128]{1,0:T(1,128)}', space=vmem, size = 0x9000, scoped, tag = 'internal scratch']
  #allocation2 [shape = 'f32[8,128]{1,0:T(8,128)}', space=vmem, size = 0x1000, scoped, tag = 'scratch operand']
  %s0 = inlined_call_operand.hbm [shape: f32[8,128], index: 0, kind: input, shape index: {}]
  %s1 = inlined_call_operand.hbm [shape: f32[128,128], index: 1, kind: input, shape index: {}]
  %s2 = inlined_call_operand.vmem [shape: f32[1,128], index: 2, kind: input, shape index: {}]
  %s3 = inlined_call_operand.hbm [shape: f32[128,128], index: 3, kind: input, shape index: {}]
  %s4 = inlined_call_operand.vmem [shape: f32[1,128], index: 4, kind: input, shape index: {}]
  %s5 = inlined_call_operand.hbm [shape: f32[8,128], index: 5, kind: output, shape index: {}]
  %s6 = sld [smem:[#allocation0]]
  $region50: #{tpu_custom_call.1} parent=0
    _
  %s8 = ssub.s32 1, %s6
  %s9 = scalar_select 0, %s8, %s6
  $region1: #{tpu_custom_call.1} parent=0
    #allocation3 [shape = 'u8[4096]{0}', space=vmem, size = 0x1000, scoped, tag = 'input window, operand 0, single buffered']
    #allocation4 [shape = 's32[1]{0}', space=sflag, size = 0x4, scoped, tag = 'scoped memory for tpu_custom_call.1']
    #allocation5 [shape = 's32[1]{0}', space=sflag, size = 0x4, scoped, tag = 'scoped memory for tpu_custom_call.1']
    #allocation6 [shape = 'u8[65536]{0}', space=vmem, size = 0x10000, scoped, tag = 'input window, operand 1, single buffered']
    #allocation7 [shape = 's32[1]{0}', space=sflag, size = 0x4, scoped, tag = 'scoped memory for tpu_custom_call.1']
    #allocation8 [shape = 'u8[65536]{0}', space=vmem, size = 0x10000, scoped, tag = 'input window, operand 3, single buffered']
    #allocation9 [shape = 'u8[4096]{0}', space=vmem, size = 0x1000, scoped, tag = 'output window, operand 0, single buffered']
    %10 = vsyncpa [#allocation4], 0
    %11 = vsyncpa [#allocation7], 0
    %12 = vsyncpa [#allocation5], 0
    // Predicated region
    $region2: #{tpu_custom_call.1} parent=1 // pred_check
      _
    $region3: #{tpu_custom_call.1} parent=1 // pred_check_branch
      %14 = sbr.rel (0) target = $region5
    $region4: #{tpu_custom_call.1} parent=1 // pred_region
      %16 = vsyncadd [#allocation4], 0
      %s18 = sshll.u32 %s0, 4
      %s19 = int_to_ptr.hbm [resolvable:$true] %s18
      %s20 = sshll.u32 [#allocation3], 4
      %s21 = int_to_ptr.vmem [resolvable:$true] %s20
      %23 = dma.hbm_to_vmem [thread:$0]  %s19, 128, %s21, [#allocation4]
    $region5: #{tpu_custom_call.1} parent=1 // pred_fallthru
      _
    // Predicated region
    $region6: #{tpu_custom_call.1} parent=1 // pred_check
      _
    $region7: #{tpu_custom_call.1} parent=1 // pred_check_branch
      %25 = sbr.rel (0) target = $region9
    $region8: #{tpu_custom_call.1} parent=1 // pred_region
      %27 = vsyncadd [#allocation7], 0
      %s28 = sshll.u32 %s1, 4
      %s29 = int_to_ptr.hbm [resolvable:$true] %s28
      %s30 = sshll.u32 [#allocation6], 4
      %s31 = int_to_ptr.vmem [resolvable:$true] %s30
      %36 = dma.hbm_to_vmem [thread:$0]  %s29, 2048, %s31, [#allocation7], 128, 128, 8
    $region9: #{tpu_custom_call.1} parent=1 // pred_fallthru
      _
    // Predicated region
    $region10: #{tpu_custom_call.1} parent=1 // pred_check
      _
    $region11: #{tpu_custom_call.1} parent=1 // pred_check_branch
      %38 = sbr.rel (0) target = $region13
    $region12: #{tpu_custom_call.1} parent=1 // pred_region
      _
    $region13: #{tpu_custom_call.1} parent=1 // pred_fallthru
      _
    // Predicated region
    $region14: #{tpu_custom_call.1} parent=1 // pred_check
      _
    $region15: #{tpu_custom_call.1} parent=1 // pred_check_branch
      %40 = sbr.rel (0) target = $region17
    $region16: #{tpu_custom_call.1} parent=1 // pred_region
      %42 = vsyncadd [#allocation7], 0
      %s43 = sshll.u32 %s3, 4
      %s44 = int_to_ptr.hbm [resolvable:$true] %s43
      %s45 = sshll.u32 [#allocation8], 4
      %s46 = int_to_ptr.vmem [resolvable:$true] %s45
      %51 = dma.hbm_to_vmem [thread:$0]  %s44, 2048, %s46, [#allocation7], 128, 128, 8
    $region17: #{tpu_custom_call.1} parent=1 // pred_fallthru
      _
    // Predicated region
    $region18: #{tpu_custom_call.1} parent=1 // pred_check
      _
    $region19: #{tpu_custom_call.1} parent=1 // pred_check_branch
      %53 = sbr.rel (0) target = $region21
    $region20: #{tpu_custom_call.1} parent=1 // pred_region
      _
    $region21: #{tpu_custom_call.1} parent=1 // pred_fallthru
      _
    // Predicated region
    $region22: #{tpu_custom_call.1} parent=1 // pred_check
      _
    $region23: #{tpu_custom_call.1} parent=1 // pred_check_branch
      %55 = sbr.rel (0) target = $region25
    $region24: #{tpu_custom_call.1} parent=1 // pred_region
      %57 = dma.done [#allocation4], 128
    $region25: #{tpu_custom_call.1} parent=1 // pred_fallthru
      _
    // Predicated region
    $region26: #{tpu_custom_call.1} parent=1 // pred_check
      _
    $region27: #{tpu_custom_call.1} parent=1 // pred_check_branch
      %59 = sbr.rel (0) target = $region29
    $region28: #{tpu_custom_call.1} parent=1 // pred_region
      %61 = dma.done [#allocation7], 2048
    $region29: #{tpu_custom_call.1} parent=1 // pred_fallthru
      _
    // Predicated region
    $region30: #{tpu_custom_call.1} parent=1 // pred_check
      _
    $region31: #{tpu_custom_call.1} parent=1 // pred_check_branch
      %63 = sbr.rel (0) target = $region33
    $region32: #{tpu_custom_call.1} parent=1 // pred_region
      %65 = dma.done [#allocation7], 2048
    $region33: #{tpu_custom_call.1} parent=1 // pred_fallthru
      _
    %p66 = scmp.eq.s32.totalorder 0, 0
    // Predicated region
    $region34: #{tpu_custom_call.1} parent=1 // pred_check
      %p67 = pneg %p66
    $region35: #{tpu_custom_call.1} parent=1 // pred_check_branch
      %69 = sbr.rel (%p67) target = $region37
    $region36: #{tpu_custom_call.1} parent=1 // pred_region
      %70 = vst [vmem:[#allocation2] sm:$0xff] 0.0
    $region37: #{tpu_custom_call.1} parent=1 // pred_fallthru
      _
    %v71 = vld [vmem:[#allocation2] sm:$0xff]
    %v72 = vld [vmem:[#allocation3] sm:$0xff]
    %v73 = vld [vmem:[#allocation6] sm:$0xff]
    %v74 = vld [vmem:[#allocation6 + $0x8] sm:$0xff]
    %v75 = vld [vmem:[#allocation6 + $0x10] sm:$0xff]
    %v76 = vld [vmem:[#allocation6 + $0x18] sm:$0xff]
    %v77 = vld [vmem:[#allocation6 + $0x20] sm:$0xff]
    %v78 = vld [vmem:[#allocation6 + $0x28] sm:$0xff]
    %v79 = vld [vmem:[#allocation6 + $0x30] sm:$0xff]
    %v80 = vld [vmem:[#allocation6 + $0x38] sm:$0xff]
    %v81 = vld [vmem:[#allocation6 + $0x40] sm:$0xff]
    %v82 = vld [vmem:[#allocation6 + $0x48] sm:$0xff]
    %v83 = vld [vmem:[#allocation6 + $0x50] sm:$0xff]
    %v84 = vld [vmem:[#allocation6 + $0x58] sm:$0xff]
    %v85 = vld [vmem:[#allocation6 + $0x60] sm:$0xff]
    %v86 = vld [vmem:[#allocation6 + $0x68] sm:$0xff]
    %v87 = vld [vmem:[#allocation6 + $0x70] sm:$0xff]
    %v88 = vld [vmem:[#allocation6 + $0x78] sm:$0xff]
    %89 = vmatpush.msra.mxu0 %v88
    %90 = vmatpush.msra.mxu0 %v87
    %91 = vmatpush.msra.mxu0 %v86
    %92 = vmatpush.msra.mxu0 %v85
    %93 = vmatpush.msra.mxu0 %v84
    %94 = vmatpush.msra.mxu0 %v83
    %95 = vmatpush.msra.mxu0 %v82
    %96 = vmatpush.msra.mxu0 %v81
    %97 = vmatpush.msra.mxu0 %v80
    %98 = vmatpush.msra.mxu0 %v79
    %99 = vmatpush.msra.mxu0 %v78
    %100 = vmatpush.msra.mxu0 %v77
    %101 = vmatpush.msra.mxu0 %v76
    %102 = vmatpush.msra.mxu0 %v75
    %103 = vmatpush.msra.mxu0 %v74
    %104 = vmatpush.msra.mxu0 %v73
    %105 = vmatmul.f32.gmra.mxu0 %v72
    %v106 = vpop.f32.mrf.mxu0
    %v107 = vadd.f32 0.0, %v106
    %108 = vdwg.mxu0
    %v109 = vadd.f32 %v71, %v107
    %110 = vst [vmem:[#allocation2] sm:$0xff] %v109
    // Predicated region
    $region38: #{tpu_custom_call.1} parent=1 // pred_check
      %p111 = pneg %p66
    $region39: #{tpu_custom_call.1} parent=1 // pred_check_branch
      %113 = sbr.rel (%p111) target = $region41
    $region40: #{tpu_custom_call.1} parent=1 // pred_region
      %v114 = vld [vmem:[#allocation2] sm:$0xff]
      %v115 = vld [vmem:[%s2] sm:$0x1]
      %v117 = vperm.slane %v115, 0
      %v119 = vadd.f32 %v114, %v117
      %v120 = vld [vmem:[#allocation8] sm:$0xff]
      %v121 = vld [vmem:[#allocation8 + $0x8] sm:$0xff]
      %v122 = vld [vmem:[#allocation8 + $0x10] sm:$0xff]
      %v123 = vld [vmem:[#allocation8 + $0x18] sm:$0xff]
      %v124 = vld [vmem:[#allocation8 + $0x20] sm:$0xff]
      %v125 = vld [vmem:[#allocation8 + $0x28] sm:$0xff]
      %v126 = vld [vmem:[#allocation8 + $0x30] sm:$0xff]
      %v127 = vld [vmem:[#allocation8 + $0x38] sm:$0xff]
      %v128 = vld [vmem:[#allocation8 + $0x40] sm:$0xff]
      %v129 = vld [vmem:[#allocation8 + $0x48] sm:$0xff]
      %v130 = vld [vmem:[#allocation8 + $0x50] sm:$0xff]
      %v131 = vld [vmem:[#allocation8 + $0x58] sm:$0xff]
      %v132 = vld [vmem:[#allocation8 + $0x60] sm:$0xff]
      %v133 = vld [vmem:[#allocation8 + $0x68] sm:$0xff]
      %v134 = vld [vmem:[#allocation8 + $0x70] sm:$0xff]
      %v135 = vld [vmem:[#allocation8 + $0x78] sm:$0xff]
      %v136 = vld [vmem:[%s4] sm:$0x1]
      %v138 = vperm.slane %v136, 0
      %140 = vmatpush.msra.mxu0 %v135
      %141 = vmatpush.msra.mxu0 %v134
      %142 = vmatpush.msra.mxu0 %v133
      %143 = vmatpush.msra.mxu0 %v132
      %144 = vmatpush.msra.mxu0 %v131
      %145 = vmatpush.msra.mxu0 %v130
      %146 = vmatpush.msra.mxu0 %v129
      %147 = vmatpush.msra.mxu0 %v128
      %148 = vmatpush.msra.mxu0 %v127
      %149 = vmatpush.msra.mxu0 %v126
      %150 = vmatpush.msra.mxu0 %v125
      %151 = vmatpush.msra.mxu0 %v124
      %152 = vmatpush.msra.mxu0 %v123
      %153 = vmatpush.msra.mxu0 %v122
      %154 = vmatpush.msra.mxu0 %v121
      %155 = vmatpush.msra.mxu0 %v120
      %156 = vmatmul.f32.gmra.mxu0 %v119
      %v157 = vpop.f32.mrf.mxu0
      %v158 = vadd.f32 %v138, %v157
      %159 = vdwg.mxu0
      %v160 = vlaneseq
      %v161 = vand.u32 %v160, 127
      %vm162 = vcmp.lt.s32.totalorder %v161, 2
      %v163 = vsel %vm162, %v158, -1e+30
      %164 = vmax.xlane.f32.xlu0 %v163
      %v165 = vpop.xlane.xlu0 %164
      %v166 = vsub.f32 %v163, %v165
      %v167 = vmul.f32 %v166, 1.442695
      %v168 = vpow.pop %v167
      %169 = vadd.xlane.f32.xlu0 %v168
      %v170 = vpop.xlane.xlu0 %169
      %v171 = vlog2.pop %v170
      %v172 = vmul.f32 %v171, 0.6931472
      %v173 = vsub.f32 %v166, %v172
      %174 = vst [vmem:[#allocation9] sm:$0xff] %v173
    $region41: #{tpu_custom_call.1} parent=1 // pred_fallthru
      _
    // Predicated region
    $region42: #{tpu_custom_call.1} parent=1 // pred_check
      _
    $region43: #{tpu_custom_call.1} parent=1 // pred_check_branch
      %176 = sbr.rel (0) target = $region45
    $region44: #{tpu_custom_call.1} parent=1 // pred_region
      %178 = vsyncadd [#allocation5], 0
      %s180 = sshll.u32 [#allocation9], 4
      %s181 = int_to_ptr.vmem [resolvable:$true] %s180
      %s182 = sshll.u32 %s5, 4
      %s183 = int_to_ptr.hbm [resolvable:$true] %s182
      %185 = dma.vmem_to_hbm [thread:$0]  %s181, 128, %s183, [#allocation5]
    $region45: #{tpu_custom_call.1} parent=1 // pred_fallthru
      _
    // Predicated region
    $region46: #{tpu_custom_call.1} parent=1 // pred_check
      _
    $region47: #{tpu_custom_call.1} parent=1 // pred_check_branch
      %187 = sbr.rel (0) target = $region49
    $region48: #{tpu_custom_call.1} parent=1 // pred_region
      %189 = dma.done [#allocation5], 128
    $region49: #{tpu_custom_call.1} parent=1 // pred_fallthru
      _
    %190 = vsyncpa [#allocation4], 1
    %191 = vsyncpa [#allocation7], 1
    %192 = vsyncpa [#allocation5], 1

// kernel: tpu_custom_call.1
$region0: #{tpu_custom_call.1}
  #allocation0 [shape = 'u32[]', space=smem, size = 0x4, offset = 0x4, fixed_abs, tag = 'smem constant byte address 0x4 - core index']
  #allocation1 [shape = 'u32[72,128]{1,0:T(1,128)}', space=vmem, size = 0x9000, scoped, tag = 'internal scratch']
  #allocation2 [shape = 'f32[8,128]{1,0:T(8,128)}', space=vmem, size = 0x1000, scoped, tag = 'scratch operand']
  %s0 = inlined_call_operand.hbm [shape: f32[8,128], index: 0, kind: input, shape index: {}]
  %s1 = inlined_call_operand.hbm [shape: f32[128,128], index: 1, kind: input, shape index: {}]
  %s2 = inlined_call_operand.vmem [shape: f32[1,128], index: 2, kind: input, shape index: {}]
  %s3 = inlined_call_operand.hbm [shape: f32[128,128], index: 3, kind: input, shape index: {}]
  %s4 = inlined_call_operand.vmem [shape: f32[1,128], index: 4, kind: input, shape index: {}]
  %s5 = inlined_call_operand.hbm [shape: f32[8,128], index: 5, kind: output, shape index: {}]
  %s6 = sld [smem:[#allocation0]]
  $region50: #{tpu_custom_call.1} parent=0
    _
  %s8 = ssub.s32 1, %s6
  %s9 = scalar_select 0, %s8, %s6
  $region1: #{tpu_custom_call.1} parent=0
    #allocation3 [shape = 'u8[4096]{0}', space=vmem, size = 0x1000, scoped, tag = 'input window, operand 0, single buffered']
    #allocation4 [shape = 's32[1]{0}', space=sflag, size = 0x4, scoped, tag = 'scoped memory for tpu_custom_call.1']
    #allocation5 [shape = 's32[1]{0}', space=sflag, size = 0x4, scoped, tag = 'scoped memory for tpu_custom_call.1']
    #allocation6 [shape = 'u8[65536]{0}', space=vmem, size = 0x10000, scoped, tag = 'input window, operand 1, single buffered']
    #allocation7 [shape = 's32[1]{0}', space=sflag, size = 0x4, scoped, tag = 'scoped memory for tpu_custom_call.1']
    #allocation8 [shape = 'u8[65536]{0}', space=vmem, size = 0x10000, scoped, tag = 'input window, operand 3, single buffered']
    #allocation9 [shape = 'u8[4096]{0}', space=vmem, size = 0x1000, scoped, tag = 'output window, operand 0, single buffered']
    %10 = vsyncpa [#allocation4], 0
    %11 = vsyncpa [#allocation7], 0
    %12 = vsyncpa [#allocation5], 0
    // Predicated region
    $region2: #{tpu_custom_call.1} parent=1 // pred_check
      _
    $region3: #{tpu_custom_call.1} parent=1 // pred_check_branch
      %14 = sbr.rel (0) target = $region5
    $region4: #{tpu_custom_call.1} parent=1 // pred_region
      %16 = vsyncadd [#allocation4], 0
      %s18 = sshll.u32 %s0, 4
      %s19 = int_to_ptr.hbm [resolvable:$true] %s18
      %s20 = sshll.u32 [#allocation3], 4
      %s21 = int_to_ptr.vmem [resolvable:$true] %s20
      %23 = dma.hbm_to_vmem [thread:$0]  %s19, 128, %s21, [#allocation4]
    $region5: #{tpu_custom_call.1} parent=1 // pred_fallthru
      _
    // Predicated region
    $region6: #{tpu_custom_call.1} parent=1 // pred_check
      _
    $region7: #{tpu_custom_call.1} parent=1 // pred_check_branch
      %25 = sbr.rel (0) target = $region9
    $region8: #{tpu_custom_call.1} parent=1 // pred_region
      %27 = vsyncadd [#allocation7], 0
      %s28 = sshll.u32 %s1, 4
      %s29 = int_to_ptr.hbm [resolvable:$true] %s28
      %s30 = sshll.u32 [#allocation6], 4
      %s31 = int_to_ptr.vmem [resolvable:$true] %s30
      %36 = dma.hbm_to_vmem [thread:$0]  %s29, 2048, %s31, [#allocation7], 128, 128, 8
    $region9: #{tpu_custom_call.1} parent=1 // pred_fallthru
      _
    // Predicated region
    $region10: #{tpu_custom_call.1} parent=1 // pred_check
      _
    $region11: #{tpu_custom_call.1} parent=1 // pred_check_branch
      %38 = sbr.rel (0) target = $region13
    $region12: #{tpu_custom_call.1} parent=1 // pred_region
      _
    $region13: #{tpu_custom_call.1} parent=1 // pred_fallthru
      _
    // Predicated region
    $region14: #{tpu_custom_call.1} parent=1 // pred_check
      _
    $region15: #{tpu_custom_call.1} parent=1 // pred_check_branch
      %40 = sbr.rel (0) target = $region17
    $region16: #{tpu_custom_call.1} parent=1 // pred_region
      %42 = vsyncadd [#allocation7], 0
      %s43 = sshll.u32 %s3, 4
      %s44 = int_to_ptr.hbm [resolvable:$true] %s43
      %s45 = sshll.u32 [#allocation8], 4
      %s46 = int_to_ptr.vmem [resolvable:$true] %s45
      %51 = dma.hbm_to_vmem [thread:$0]  %s44, 2048, %s46, [#allocation7], 128, 128, 8
    $region17: #{tpu_custom_call.1} parent=1 // pred_fallthru
      _
    // Predicated region
    $region18: #{tpu_custom_call.1} parent=1 // pred_check
      _
    $region19: #{tpu_custom_call.1} parent=1 // pred_check_branch
      %53 = sbr.rel (0) target = $region21
    $region20: #{tpu_custom_call.1} parent=1 // pred_region
      _
    $region21: #{tpu_custom_call.1} parent=1 // pred_fallthru
      _
    // Predicated region
    $region22: #{tpu_custom_call.1} parent=1 // pred_check
      _
    $region23: #{tpu_custom_call.1} parent=1 // pred_check_branch
      %55 = sbr.rel (0) target = $region25
    $region24: #{tpu_custom_call.1} parent=1 // pred_region
      %57 = dma.done [#allocation4], 128
    $region25: #{tpu_custom_call.1} parent=1 // pred_fallthru
      _
    // Predicated region
    $region26: #{tpu_custom_call.1} parent=1 // pred_check
      _
    $region27: #{tpu_custom_call.1} parent=1 // pred_check_branch
      %59 = sbr.rel (0) target = $region29
    $region28: #{tpu_custom_call.1} parent=1 // pred_region
      %61 = dma.done [#allocation7], 2048
    $region29: #{tpu_custom_call.1} parent=1 // pred_fallthru
      _
    // Predicated region
    $region30: #{tpu_custom_call.1} parent=1 // pred_check
      _
    $region31: #{tpu_custom_call.1} parent=1 // pred_check_branch
      %63 = sbr.rel (0) target = $region33
    $region32: #{tpu_custom_call.1} parent=1 // pred_region
      %65 = dma.done [#allocation7], 2048
    $region33: #{tpu_custom_call.1} parent=1 // pred_fallthru
      _
    %p66 = scmp.eq.s32.totalorder 0, 0
    // Predicated region
    $region34: #{tpu_custom_call.1} parent=1 // pred_check
      %p67 = pneg %p66
    $region35: #{tpu_custom_call.1} parent=1 // pred_check_branch
      %69 = sbr.rel (%p67) target = $region37
    $region36: #{tpu_custom_call.1} parent=1 // pred_region
      %70 = vst [vmem:[#allocation2] sm:$0xff] 0.0
    $region37: #{tpu_custom_call.1} parent=1 // pred_fallthru
      _
    %v71 = vld [vmem:[#allocation2] sm:$0xff]
    %v72 = vld [vmem:[#allocation3] sm:$0xff]
    %v73 = vld [vmem:[#allocation6] sm:$0xff]
    %v74 = vld [vmem:[#allocation6 + $0x8] sm:$0xff]
    %v75 = vld [vmem:[#allocation6 + $0x10] sm:$0xff]
    %v76 = vld [vmem:[#allocation6 + $0x18] sm:$0xff]
    %v77 = vld [vmem:[#allocation6 + $0x20] sm:$0xff]
    %v78 = vld [vmem:[#allocation6 + $0x28] sm:$0xff]
    %v79 = vld [vmem:[#allocation6 + $0x30] sm:$0xff]
    %v80 = vld [vmem:[#allocation6 + $0x38] sm:$0xff]
    %v81 = vld [vmem:[#allocation6 + $0x40] sm:$0xff]
    %v82 = vld [vmem:[#allocation6 + $0x48] sm:$0xff]
    %v83 = vld [vmem:[#allocation6 + $0x50] sm:$0xff]
    %v84 = vld [vmem:[#allocation6 + $0x58] sm:$0xff]
    %v85 = vld [vmem:[#allocation6 + $0x60] sm:$0xff]
    %v86 = vld [vmem:[#allocation6 + $0x68] sm:$0xff]
    %v87 = vld [vmem:[#allocation6 + $0x70] sm:$0xff]
    %v88 = vld [vmem:[#allocation6 + $0x78] sm:$0xff]
    %89 = vmatpush.msra.mxu0 %v88
    %90 = vmatpush.msra.mxu0 %v87
    %91 = vmatpush.msra.mxu0 %v86
    %92 = vmatpush.msra.mxu0 %v85
    %93 = vmatpush.msra.mxu0 %v84
    %94 = vmatpush.msra.mxu0 %v83
    %95 = vmatpush.msra.mxu0 %v82
    %96 = vmatpush.msra.mxu0 %v81
    %97 = vmatpush.msra.mxu0 %v80
    %98 = vmatpush.msra.mxu0 %v79
    %99 = vmatpush.msra.mxu0 %v78
    %100 = vmatpush.msra.mxu0 %v77
    %101 = vmatpush.msra.mxu0 %v76
    %102 = vmatpush.msra.mxu0 %v75
    %103 = vmatpush.msra.mxu0 %v74
    %104 = vmatpush.msra.mxu0 %v73
    %105 = vmatmul.f32.gmra.mxu0 %v72
    %v106 = vpop.f32.mrf.mxu0
    %v107 = vadd.f32 0.0, %v106
    %108 = vdwg.mxu0
    %v109 = vadd.f32 %v71, %v107
    %110 = vst [vmem:[#allocation2] sm:$0xff] %v109
    // Predicated region
    $region38: #{tpu_custom_call.1} parent=1 // pred_check
      %p111 = pneg %p66
    $region39: #{tpu_custom_call.1} parent=1 // pred_check_branch
      %113 = sbr.rel (%p111) target = $region41
    $region40: #{tpu_custom_call.1} parent=1 // pred_region
      %v114 = vld [vmem:[#allocation2] sm:$0xff]
      %v115 = vld [vmem:[%s2] sm:$0x1]
      %v117 = vperm.slane %v115, 0
      %v119 = vadd.f32 %v114, %v117
      %v120 = vld [vmem:[#allocation8] sm:$0xff]
      %v121 = vld [vmem:[#allocation8 + $0x8] sm:$0xff]
      %v122 = vld [vmem:[#allocation8 + $0x10] sm:$0xff]
      %v123 = vld [vmem:[#allocation8 + $0x18] sm:$0xff]
      %v124 = vld [vmem:[#allocation8 + $0x20] sm:$0xff]
      %v125 = vld [vmem:[#allocation8 + $0x28] sm:$0xff]
      %v126 = vld [vmem:[#allocation8 + $0x30] sm:$0xff]
      %v127 = vld [vmem:[#allocation8 + $0x38] sm:$0xff]
      %v128 = vld [vmem:[#allocation8 + $0x40] sm:$0xff]
      %v129 = vld [vmem:[#allocation8 + $0x48] sm:$0xff]
      %v130 = vld [vmem:[#allocation8 + $0x50] sm:$0xff]
      %v131 = vld [vmem:[#allocation8 + $0x58] sm:$0xff]
      %v132 = vld [vmem:[#allocation8 + $0x60] sm:$0xff]
      %v133 = vld [vmem:[#allocation8 + $0x68] sm:$0xff]
      %v134 = vld [vmem:[#allocation8 + $0x70] sm:$0xff]
      %v135 = vld [vmem:[#allocation8 + $0x78] sm:$0xff]
      %v136 = vld [vmem:[%s4] sm:$0x1]
      %v138 = vperm.slane %v136, 0
      %140 = vmatpush.msra.mxu0 %v135
      %141 = vmatpush.msra.mxu0 %v134
      %142 = vmatpush.msra.mxu0 %v133
      %143 = vmatpush.msra.mxu0 %v132
      %144 = vmatpush.msra.mxu0 %v131
      %145 = vmatpush.msra.mxu0 %v130
      %146 = vmatpush.msra.mxu0 %v129
      %147 = vmatpush.msra.mxu0 %v128
      %148 = vmatpush.msra.mxu0 %v127
      %149 = vmatpush.msra.mxu0 %v126
      %150 = vmatpush.msra.mxu0 %v125
      %151 = vmatpush.msra.mxu0 %v124
      %152 = vmatpush.msra.mxu0 %v123
      %153 = vmatpush.msra.mxu0 %v122
      %154 = vmatpush.msra.mxu0 %v121
      %155 = vmatpush.msra.mxu0 %v120
      %156 = vmatmul.f32.gmra.mxu0 %v119
      %v157 = vpop.f32.mrf.mxu0
      %v158 = vadd.f32 %v138, %v157
      %159 = vdwg.mxu0
      %v160 = vlaneseq
      %v161 = vand.u32 %v160, 127
      %vm162 = vcmp.lt.s32.totalorder %v161, 2
      %v163 = vsel %vm162, %v158, -1e+30
      %164 = vmax.xlane.f32.xlu0 %v163
      %v165 = vpop.xlane.xlu0 %164
      %v166 = vsub.f32 %v163, %v165
      %v167 = vmul.f32 %v166, 1.442695
      %v168 = vpow.pop %v167
      %169 = vadd.xlane.f32.xlu0 %v168
      %v170 = vpop.xlane.xlu0 %169
      %v171 = vlog2.pop %v170
      %v172 = vmul.f32 %v171, 0.6931472
      %v173 = vsub.f32 %v166, %v172
      %174 = vst [vmem:[#allocation9] sm:$0xff] %v173
    $region41: #{tpu_custom_call.1} parent=1 // pred_fallthru
      _
    // Predicated region
    $region42: #{tpu_custom_call.1} parent=1 // pred_check
      _
    $region43: #{tpu_custom_call.1} parent=1 // pred_check_branch
      %176 = sbr.rel (0) target = $region45
    $region44: #{tpu_custom_call.1} parent=1 // pred_region
      %178 = vsyncadd [#allocation5], 0
      %s180 = sshll.u32 [#allocation9], 4
      %s181 = int_to_ptr.vmem [resolvable:$true] %s180
      %s182 = sshll.u32 %s5, 4
      %s183 = int_to_ptr.hbm [resolvable:$true] %s182
      %185 = dma.vmem_to_hbm [thread:$0]  %s181, 128, %s183, [#allocation5]
    $region45: #{tpu_custom_call.1} parent=1 // pred_fallthru
      _
    // Predicated region
    $region46: #{tpu_custom_call.1} parent=1 // pred_check
      _
    $region47: #{tpu_custom_call.1} parent=1 // pred_check_branch
      %187 = sbr.rel (0) target = $region49
    $region48: #{tpu_custom_call.1} parent=1 // pred_region
      %189 = dma.done [#allocation5], 128
    $region49: #{tpu_custom_call.1} parent=1 // pred_fallthru
      _
    %190 = vsyncpa [#allocation4], 1
    %191 = vsyncpa [#allocation7], 1
    %192 = vsyncpa [#allocation5], 1

</llo_original>
